<compile_context>
chip_gen: v5e
topology: v5e:2x2
jax: 0.10.0
libtpu: 0.0.40
codegen_flags: <defaults>
</compile_context>

<pallas_src>
import functools

import jax
import jax.numpy as jnp
from jax.experimental import pallas as pl
from jax.experimental.pallas import tpu as pltpu


def _round_up(v, m):
    return ((v + m - 1) // m) * m


# ----------------------------------------------------------------------------
# Kernels
# ----------------------------------------------------------------------------
def _matmul_fullk_kernel(x_ref, w_ref, o_ref):
    # Whole K resident in VMEM: no reduction axis, no accumulator needed.
    o_ref[...] = jnp.dot(
        x_ref[...], w_ref[...], preferred_element_type=jnp.float32
    ).astype(o_ref.dtype)


def _matmul_ktiled_kernel(x_ref, w_ref, o_ref, acc_ref):
    # Reduction axis K is the last grid dimension ("arbitrary").
    @pl.when(pl.program_id(2) == 0)
    def _():
        acc_ref[...] = jnp.zeros_like(acc_ref)

    acc_ref[...] += jnp.dot(
        x_ref[...], w_ref[...], preferred_element_type=jnp.float32
    )

    @pl.when(pl.program_id(2) == pl.num_programs(2) - 1)
    def _():
        o_ref[...] = acc_ref[...].astype(o_ref.dtype)


# ----------------------------------------------------------------------------
# Wrapper
# ----------------------------------------------------------------------------
@functools.partial(
    jax.jit,
    static_argnames=("tm", "tn", "tk", "full_k", "out_dim", "compute_dtype"),
)
def _linear_forward(x2d, w_prep, *, tm, tn, tk, full_k, out_dim, compute_dtype):
    """x2d: [M, K] f32 activations, w_prep: [Kp, Np] pre-transposed bf16 weight."""
    m, k = x2d.shape
    kp, np_ = w_prep.shape
    mp = _round_up(m, tm)

    # Cast to the compute dtype; pad M (and K for the tiled path) with zeros.
    # The pad fuses with the cast, and K zero-padding is mathematically exact.
    x_p = x2d.astype(compute_dtype)
    pad_m, pad_k = mp - m, kp - k
    if pad_m or pad_k:
        x_p = jnp.pad(x_p, ((0, pad_m), (0, pad_k)))

    in_itemsize = jnp.dtype(compute_dtype).itemsize

    if full_k:
        grid = (mp // tm, np_ // tn)
        kernel = _matmul_fullk_kernel
        in_specs = [
            pl.BlockSpec((tm, kp), lambda i, j: (i, 0)),
            pl.BlockSpec((kp, tn), lambda i, j: (0, j)),
        ]
        out_specs = pl.BlockSpec((tm, tn), lambda i, j: (i, j))
        scratch_shapes = []
        dim_sem = ("parallel", "parallel")
        vmem_need = (
            2 * (tm * kp + kp * tn) * in_itemsize + 2 * tm * tn * 4 + (1 << 20)
        )
    else:
        grid = (mp // tm, np_ // tn, kp // tk)
        kernel = _matmul_ktiled_kernel
        in_specs = [
            pl.BlockSpec((tm, tk), lambda i, j, kk: (i, kk)),
            pl.BlockSpec((tk, tn), lambda i, j, kk: (kk, j)),
        ]
        out_specs = pl.BlockSpec((tm, tn), lambda i, j, kk: (i, j))
        scratch_shapes = [pltpu.VMEM((tm, tn), jnp.float32)]
        dim_sem = ("parallel", "parallel", "arbitrary")
        vmem_need = (
            2 * (tm * tk + tk * tn) * in_itemsize
            + 2 * tm * tn * 4
            + tm * tn * 4
            + (1 << 20)
        )

    flops = 2 * mp * np_ * kp
    bytes_accessed = (mp * kp + kp * np_) * in_itemsize + mp * np_ * 4
    # Clamp: at least the 16 MiB default, at most 32 MiB (v7x only has 64 MiB).
    vmem_limit = int(min(max(vmem_need, 16 << 20), 32 << 20))

    out_p = pl.pallas_call(
        kernel,
        out_shape=jax.ShapeDtypeStruct((mp, np_), jnp.float32),
        grid_spec=pltpu.PrefetchScalarGridSpec(
            num_scalar_prefetch=0,
            grid=grid,
            in_specs=in_specs,
            out_specs=out_specs,
            scratch_shapes=scratch_shapes,
        ),
        compiler_params=pltpu.CompilerParams(
            dimension_semantics=dim_sem,
            vmem_limit_bytes=vmem_limit,
        ),
        cost_estimate=pl.CostEstimate(
            flops=flops, transcendentals=0, bytes_accessed=bytes_accessed
        ),
    )(x_p, w_prep)

    # Only pay for an output slice when padding was actually introduced.
    if mp != m or np_ != out_dim:
        out_p = out_p[:m, :out_dim]
    return out_p


# ----------------------------------------------------------------------------
# Module
# ----------------------------------------------------------------------------
class Classifier:
    """JAX/Pallas port of the PyTorch Classifier module (bias=False)."""

    _TN_MAX = 1024          # max N tile (lane-dense, multiple of 128/256)
    _TK_MAX = 512           # max K tile for the K-tiled path
    _MAX_FULL_K = 2048      # up to here the whole K panel stays resident
    _TM_CHOICES = (16, 32, 64, 128, 256)   # multiples of 16 (bf16 sublanes)
    _FALLBACK_FLOPS = 1 << 20              # below this: fused XLA dot

    def __init__(self, in_dim, out_dim, key, bias=False,
                 compute_dtype=jnp.bfloat16):
        assert not bias, "reference module is constructed with bias=False"
        self.in_dim = in_dim
        self.out_dim = out_dim
        self.compute_dtype = compute_dtype

        # Deterministic init mimicking nn.Linear's kaiming-uniform bound.
        bound = 1.0 / float(in_dim) ** 0.5
        # PyTorch-layout weight [out_dim, in_dim], f32 master copy.
        self.weight = jax.random.uniform(
            key, (out_dim, in_dim), jnp.float32, -bound, bound
        )

        # Tile-first, pad-to-tile (zero pad along K is exact, N pad is sliced).
        self.tn, np_ = self._tile_and_pad(out_dim, 128, self._TN_MAX)
        self.full_k = in_dim <= self._MAX_FULL_K
        if self.full_k:
            self.tk, kp = in_dim, in_dim        # whole-K block, no K padding
        else:
            self.tk, kp = self._tile_and_pad(in_dim, 128, self._TK_MAX)
        self.np_padded = np_

        # One-time transpose + pad + bf16 cast of the weight.
        w_t = self.weight.T                      # [in_dim, out_dim]
        self.w_prep = jnp.pad(
            w_t, ((0, kp - in_dim), (0, np_ - out_dim))
        ).astype(compute_dtype)

    @staticmethod
    def _tile_and_pad(dim, base, max_tile):
        """Pick the tile first, then pad the dim up to a multiple of it."""
        padded = _round_up(dim, base)
        if padded <= max_tile:
            return padded, padded                # single tile == padded dim
        return max_tile, _round_up(dim, max_tile)

    def _pick_tm(self, m):
        for t in self._TM_CHOICES:
            if m <= t:
                return t
        return self._TM_CHOICES[-1]

    def __call__(self, x):
        x = jnp.asarray(x)
        x2d = x[None, :] if x.ndim == 1 else x
        m = x2d.shape[0]

        # Tiny heads: dispatch/DMA overhead dwarfs the FLOPs -> fused XLA dot.
        if 2 * m * self.in_dim * self.out_dim < self._FALLBACK_FLOPS:
            return jnp.dot(x2d, self.weight.T)

        tm = self._pick_tm(m)
        tn = self.tn
        # If both "parallel" axes would have extent 1, split N so the second
        # TensorCore (v7x) gets work; free on single-TC chips.
        grid_m = _round_up(m, tm) // tm
        if grid_m == 1 and self.np_padded // tn == 1:
            half = self.np_padded // 2
            if half >= 128 and half % 128 == 0:
                tn = half

        logit = _linear_forward(
            x2d, self.w_prep,
            tm=tm, tn=tn, tk=self.tk, full_k=self.full_k,
            out_dim=self.out_dim, compute_dtype=self.compute_dtype,
        )
        # PyTorch: a 1-D linear output is unsqueezed to (1, out_dim); the x2d
        # path already yields (1, out_dim), so semantics match exactly.
        return logit


# ----------------------------------------------------------------------------
# Demo / self-test
# ----------------------------------------------------------------------------
if __name__ == "__main__":
    key = jax.random.PRNGKey(0)
    k_w1, k_x1, k_w2, k_x2, k_w3, k_x3 = jax.random.split(key, 6)

    # 1) Tiny head (8 x 32 -> 16): XLA fallback + 1-D unsqueeze semantics.
    clf1 = Classifier(32, 16, k_w1)
    x1 = jax.random.normal(k_x1, (8, 32), jnp.float32)
    out1 = jax.block_until_ready(clf1(x1))
    ref1 = x1 @ clf1.weight.T
    assert out1.shape == (8, 16)
    assert jnp.allclose(out1, ref1, atol=1e-5, rtol=1e-5)

    v1 = jax.random.normal(k_x1, (32,), jnp.float32)
    out_v1 = jax.block_until_ready(clf1(v1))
    assert out_v1.shape == (1, 16)
    assert jnp.allclose(out_v1, (v1 @ clf1.weight.T)[None, :], atol=1e-5, rtol=1e-5)

    # 2) Pallas full-K path: bf16 operands / f32 accum, padded M and N,
    #    N split for the second core, output sliced back to (40, 250).
    clf2 = Classifier(512, 250, k_w2)
    x2 = jax.random.normal(k_x2, (40, 512), jnp.float32)
    out2 = jax.block_until_ready(clf2(x2))
    ref2 = x2 @ clf2.weight.T
    assert out2.shape == (40, 250)
    assert jnp.allclose(out2, ref2, atol=3e-2, rtol=3e-2)

    # 3) Pallas K-tiled path (in_dim > full-K threshold): K padded to a tile
    #    multiple, f32 VMEM accumulator with pl.when init/finalize.
    clf3 = Classifier(2304, 256, k_w3)
    x3 = jax.random.normal(k_x3, (16, 2304), jnp.float32)
    out3 = jax.block_until_ready(clf3(x3))
    ref3 = x3 @ clf3.weight.T
    assert out3.shape == (16, 256)
    assert jnp.allclose(out3, ref3, atol=3e-2, rtol=3e-2)

    print("KERNEL_OK")
</pallas_src>

<mosaic_0001>
module attributes {stable_mosaic.version = 11 : i64} {
  func.func @_matmul_fullk_kernel(%arg0: i32, %arg1: i32, %arg2: memref<64x512xbf16, #tpu.memory_space<vmem>>, %arg3: memref<512x128xbf16, #tpu.memory_space<vmem>>, %arg4: memref<64x128xf32, #tpu.memory_space<vmem>>) attributes {dimension_semantics = [#tpu.dimension_semantics<parallel>, #tpu.dimension_semantics<parallel>], iteration_bounds = array<i64: 1, 2>, scalar_prefetch = 0 : i64, scratch_operands = 0 : i64, tpu.core_type = #tpu.core_type<tc>, window_params = [{transform_indices = @transform_0, window_bounds = array<i64: 64, 512>}, {transform_indices = @transform_1, window_bounds = array<i64: 512, 128>}, {transform_indices = @transform_2, window_bounds = array<i64: 64, 128>}]} {
    %c0 = arith.constant 0 : index
    %c0_0 = arith.constant 0 : index
    %0 = vector.load %arg2[%c0, %c0_0] : memref<64x512xbf16, #tpu.memory_space<vmem>>, vector<64x512xbf16>
    %c0_1 = arith.constant 0 : index
    %c0_2 = arith.constant 0 : index
    %1 = vector.load %arg3[%c0_1, %c0_2] : memref<512x128xbf16, #tpu.memory_space<vmem>>, vector<512x128xbf16>
    %cst = arith.constant dense<0.000000e+00> : vector<64x128xf32>
    %2 = tpu.matmul %0, %1, %cst {dimension_numbers = #tpu.dot_dimension_numbers<[1], [0], [0], [1], [0, 0, 1, 1], [], []>} : vector<64x512xbf16>, vector<512x128xbf16>, vector<64x128xf32> -> vector<64x128xf32>
    %c0_3 = arith.constant 0 : index
    %c0_4 = arith.constant 0 : index
    %3 = vector.load %arg4[%c0_3, %c0_4] : memref<64x128xf32, #tpu.memory_space<vmem>>, vector<64x128xf32>
    tpu.vector_store %arg4[%c0_3, %c0_4], %2 {strides = array<i32>} : memref<64x128xf32, #tpu.memory_space<vmem>>, vector<64x128xf32>,
    return
  }
  func.func @transform_0(%arg0: i32, %arg1: i32) -> (i32, i32) {
    %c0_i32 = arith.constant 0 : i32
    %c0_i32_0 = arith.constant 0 : i32
    return %arg0, %c0_i32 : i32, i32
  }
  func.func @transform_1(%arg0: i32, %arg1: i32) -> (i32, i32) {
    %c0_i32 = arith.constant 0 : i32
    %c0_i32_0 = arith.constant 0 : i32
    return %c0_i32, %arg1 : i32, i32
  }
  func.func @transform_2(%arg0: i32, %arg1: i32) -> (i32, i32) {
    %c0_i32 = arith.constant 0 : i32
    return %arg0, %arg1 : i32, i32
  }
}

</mosaic_0001>

<llo_original>
// kernel: _linear_forward.1
$region0: #{_linear_forward.1}
  #allocation0 [shape = 'u32[]', space=smem, size = 0x4, offset = 0x4, fixed_abs, tag = 'smem constant byte address 0x4 - core index']
  #allocation1 [shape = 'u32[72,128]{1,0:T(1,128)}', space=vmem, size = 0x9000, scoped, tag = 'internal scratch']
  %s0 = inlined_call_operand.vmem [shape: bf16[64,512], index: 0, kind: input, shape index: {}]
  %s1 = inlined_call_operand.hbm [shape: bf16[512,256], index: 1, kind: input, shape index: {}]
  %s2 = inlined_call_operand.vmem [shape: f32[64,256], index: 2, kind: output, shape index: {}]
  %s3 = sld [smem:[#allocation0]]
  $region79: #{_linear_forward.1} parent=0
    _
  %s5 = ssub.s32 1, %s3
  %s6 = scalar_select 0, %s5, %s3
  $region1: #{_linear_forward.1} parent=0
    #allocation2 [shape = 'u8[262144]{0}', space=vmem, size = 0x40000, scoped, tag = 'input window, operand 1']
    #allocation3 [shape = 's32[2]{0}', space=sflag, size = 0x8, scoped, tag = 'scoped memory for _linear_forward.1']
    #allocation4 [shape = 'u8[65536]{0}', space=vmem, size = 0x10000, scoped, tag = 'output window, operand 0']
    %7 = vsyncpa [#allocation3], 0
    %s8 = scalar_lea.sflag [#allocation3], 1
    %9 = vsyncpa %s8, 0
    loop: start=0, step=1, limit=4
    $region2: #{_linear_forward.1} parent=1 // loop_pre_header
      _
    $region3: #{_linear_forward.1} parent=1 // loop_header
      %s11 = sphi 0, %s15
      %p12 = scmp.ge.s32.totalorder %s11, 4
      %s18 = sphi 0, %s30
      %s19 = sphi 0, %s26
      %s20 = sphi 0, %s18
      %s21 = sphi 0, %s19
      %s22 = sphi 0, %s20
      %s23 = sphi 0, %s21
      %s33 = sphi 0, %s35
      %s36 = sphi 0, %s33
      %s37 = sphi 0, %s36
      %s53 = sphi 0, %s37
      %s59 = sphi 0, %s61
      %s62 = sphi 0, %s59
      %s63 = sphi 0, %s62
      %s79 = sphi 0, %s63
      %s87 = sphi 0, %s89
      %s90 = sphi 0, %s87
      %s91 = sphi 0, %s90
      %s107 = sphi 0, %s91
    $region4: #{_linear_forward.1} parent=1 // loop_header_branch
      %14 = sbr.rel (%p12) target = $region8
    $region5: #{_linear_forward.1} parent=1 // loop_body
      %s16 = ssub.s32 %s11, 1
      %s17 = ssub.s32 %s11, 2
      %s24 = sadd.s32 1, %s19
      %p25 = scmp.ge.s32.totalorder %s24, 2
      %s26 = scalar_select %p25, 0, %s24
      %s27 = sadd.s32 1, %s18
      %s28 = scalar_select %p25, %s27, %s18
      %p29 = scmp.ge.s32.totalorder %s28, 1
      %s30 = scalar_select %p29, 0, %s28
      %s31 = ssub.s32 %s18, %s30
      %p32 = scmp.eq.s32.totalorder %s31, 0
      %s34 = sadd.s32 %s33, 1
      %s35 = scalar_select %p32, %s33, %s34
      %p38 = pneg %p32
      %p39 = scmp.eq.s32.totalorder %s11, 1
      %p40 = por %p38, %p39
      %p41 = scmp.ne.s32.totalorder %s33, %s36
      %p42 = scmp.eq.s32.totalorder %s11, 0
      %p43 = por %p41, %p42
      %p44 = scmp.ne.s32.totalorder %s33, %s36
      %p45 = scmp.eq.s32.totalorder %s16, 1
      %p46 = por %p44, %p45
      %p47 = scmp.ne.s32.totalorder %s36, %s37
      %p48 = scmp.eq.s32.totalorder %s16, 0
      %p49 = por %p47, %p48
      %p50 = scmp.ne.s32.totalorder %s36, %s37
      %p51 = scmp.eq.s32.totalorder %s17, 1
      %p52 = por %p50, %p51
      %p54 = scmp.ne.s32.totalorder %s37, %s53
      %p55 = scmp.eq.s32.totalorder %s17, 0
      %p56 = por %p54, %p55
      %s57 = ssub.s32 %s19, %s26
      %p58 = scmp.eq.s32.totalorder %s57, 0
      %s60 = sadd.s32 %s59, 1
      %s61 = scalar_select %p58, %s59, %s60
      %p64 = pneg %p58
      %p65 = scmp.eq.s32.totalorder %s11, 1
      %p66 = por %p64, %p65
      %p67 = scmp.ne.s32.totalorder %s59, %s62
      %p68 = scmp.eq.s32.totalorder %s11, 0
      %p69 = por %p67, %p68
      %p70 = scmp.ne.s32.totalorder %s59, %s62
      %p71 = scmp.eq.s32.totalorder %s16, 1
      %p72 = por %p70, %p71
      %p73 = scmp.ne.s32.totalorder %s62, %s63
      %p74 = scmp.eq.s32.totalorder %s16, 0
      %p75 = por %p73, %p74
      %p76 = scmp.ne.s32.totalorder %s62, %s63
      %p77 = scmp.eq.s32.totalorder %s17, 1
      %p78 = por %p76, %p77
      %p80 = scmp.ne.s32.totalorder %s63, %s79
      %p81 = scmp.eq.s32.totalorder %s17, 0
      %p82 = por %p80, %p81
      %s83 = ssub.s32 %s18, %s30
      %s84 = ssub.s32 %s19, %s26
      %s85 = sor.u32 %s83, %s84
      %p86 = scmp.eq.s32.totalorder %s85, 0
      %s88 = sadd.s32 %s87, 1
      %s89 = scalar_select %p86, %s87, %s88
      %p92 = pneg %p86
      %p93 = scmp.eq.s32.totalorder %s11, 1
      %p94 = por %p92, %p93
      %p95 = scmp.ne.s32.totalorder %s87, %s90
      %p96 = scmp.eq.s32.totalorder %s11, 0
      %p97 = por %p95, %p96
      %p98 = scmp.ne.s32.totalorder %s87, %s90
      %p99 = scmp.eq.s32.totalorder %s16, 1
      %p100 = por %p98, %p99
      %p101 = scmp.ne.s32.totalorder %s90, %s91
      %p102 = scmp.eq.s32.totalorder %s16, 0
      %p103 = por %p101, %p102
      %p104 = scmp.ne.s32.totalorder %s90, %s91
      %p105 = scmp.eq.s32.totalorder %s17, 1
      %p106 = por %p104, %p105
      %p108 = scmp.ne.s32.totalorder %s91, %s107
      %p109 = scmp.eq.s32.totalorder %s17, 0
      %p110 = por %p108, %p109
      %p111 = scmp.le.s32.totalorder 1, %s11
      %p112 = scmp.lt.s32.totalorder %s11, 3
      %p113 = pnand %p111, %p112
      %p114 = pneg %p113
      // Predicated region
      $region9: #{_linear_forward.1} parent=5 // pred_check
        _
      $region10: #{_linear_forward.1} parent=5 // pred_check_branch
        %116 = sbr.rel (%p113) target = $region12
      $region11: #{_linear_forward.1} parent=5 // pred_region
        %s117 = ssub.s32 %s11, 1
        // Predicated region
        $region13: #{_linear_forward.1} parent=11 // pred_check
          %p118 = pneg %p49
        $region14: #{_linear_forward.1} parent=11 // pred_check_branch
          %120 = sbr.rel (%p118) target = $region16
        $region15: #{_linear_forward.1} parent=11 // pred_region
          %s121 = smul.u32 8, %s20
          %p122 = scmp.lt.s32.totalorder %s121, 7
          %s123 = scalar_select %p122, %s121, 7
          %s124 = smul.addr %s123, 4
          %s125 = smul.addr %s124, 4
          %s126 = scalar_lea.vmem %s0, %s125
          %s127 = smul.u32 8, %s20
        $region16: #{_linear_forward.1} parent=11 // pred_fallthru
          _
      $region12: #{_linear_forward.1} parent=5 // pred_fallthru
        _
      %p128 = scmp.lt.s32.totalorder %s11, 2
      // Predicated region
      $region17: #{_linear_forward.1} parent=5 // pred_check
        %p129 = pneg %p128
      $region18: #{_linear_forward.1} parent=5 // pred_check_branch
        %131 = sbr.rel (%p129) target = $region20
      $region19: #{_linear_forward.1} parent=5 // pred_region
        // Predicated region
        $region21: #{_linear_forward.1} parent=19 // pred_check
          %p132 = pneg %p69
        $region22: #{_linear_forward.1} parent=19 // pred_check_branch
          %134 = sbr.rel (%p132) target = $region24
        $region23: #{_linear_forward.1} parent=19 // pred_region
          %s135 = sand.u32 %s59, 1
          %s136 = scalar_lea.sflag [#allocation3], %s135
          %s137 = sand.u32 %s59, 1
          %s138 = smul.addr %s137, 256
          %s139 = scalar_lea.vmem [#allocation2], %s138
          %141 = vsyncadd %s136, 0
          %s142 = smul.addr %s19, 4
          %s143 = scalar_lea.hbm %s1, %s142
          %s144 = sshll.u32 %s143, 4
          %s145 = int_to_ptr.hbm [resolvable:$true] %s144
          %s146 = sshll.u32 %s139, 4
          %s147 = int_to_ptr.vmem [resolvable:$true] %s146
          %152 = dma.hbm_to_vmem [thread:$0]  %s145, 4096, %s147, %s136, 128, 64, 4
        $region24: #{_linear_forward.1} parent=19 // pred_fallthru
          _
      $region20: #{_linear_forward.1} parent=5 // pred_fallthru
        _
      %p153 = scmp.le.s32.totalorder 1, %s11
      %p154 = scmp.lt.s32.totalorder %s11, 3
      %p155 = pnand %p153, %p154
      %p156 = pneg %p155
      // Predicated region
      $region25: #{_linear_forward.1} parent=5 // pred_check
        _
      $region26: #{_linear_forward.1} parent=5 // pred_check_branch
        %158 = sbr.rel (%p155) target = $region28
      $region27: #{_linear_forward.1} parent=5 // pred_region
        %s159 = ssub.s32 %s11, 1
        %s160 = sand.u32 %s62, 1
        %s161 = scalar_lea.sflag [#allocation3], %s160
        %s162 = sand.u32 %s62, 1
        %s163 = smul.addr %s162, 256
        %s164 = scalar_lea.vmem [#allocation2], %s163
        // Predicated region
        $region29: #{_linear_forward.1} parent=27 // pred_check
          %p165 = pneg %p75
        $region30: #{_linear_forward.1} parent=27 // pred_check_branch
          %167 = sbr.rel (%p165) target = $region32
        $region31: #{_linear_forward.1} parent=27 // pred_region
          %169 = dma.done %s161, 4096
        $region32: #{_linear_forward.1} parent=27 // pred_fallthru
          _
        %s170 = smul.u32 8, %s20
        %p171 = scmp.lt.s32.totalorder %s170, 7
        %s172 = scalar_select %p171, %s170, 7
        %s173 = smul.addr %s172, 4
        %s174 = smul.addr %s173, 4
        %s175 = scalar_lea.vmem %s0, %s174
        %p176 = pneg %p49
        %p177 = pneg %p46
        %s178 = sand.u32 %s62, 1
        %s179 = scalar_lea.sflag [#allocation3], %s178
        %s180 = sand.u32 %s62, 1
        %s181 = smul.addr %s180, 256
        %s182 = scalar_lea.vmem [#allocation2], %s181
        %p183 = pneg %p75
        %p184 = pneg %p72
        %p185 = pneg %p103
        %p186 = pneg %p100
        %s187 = sand.u32 %s90, 1
        %s188 = sand.u32 %s90, 1
        %s189 = smul.addr %s188, 64
        %s190 = scalar_lea.vmem [#allocation4], %s189
        %s191 = smul.u32 8, %s20
        %p192 = scmp.lt.s32.totalorder %s191, 7
        %s193 = scalar_select %p192, %s191, 7
        %s194 = smul.addr %s193, 4
        %s195 = smul.addr %s194, 4
        %s196 = scalar_lea.vmem %s0, %s195
        %s197 = smul.u32 8, %s20
        %s198 = smul.u32 8, %s20
        %v199 = vld [vmem:[%s196] sm:$0xff]
        %v200 = vld [vmem:[%s196 + $0x8] sm:$0xff]
        %v201 = vld [vmem:[%s196 + $0x10] sm:$0xff]
        %v202 = vld [vmem:[%s196 + $0x18] sm:$0xff]
        %v203 = vld [vmem:[%s196 + $0x20] sm:$0xff]
        %v204 = vld [vmem:[%s196 + $0x28] sm:$0xff]
        %v205 = vld [vmem:[%s196 + $0x30] sm:$0xff]
        %v206 = vld [vmem:[%s196 + $0x38] sm:$0xff]
        %v207 = vld [vmem:[%s196 + $0x40] sm:$0xff]
        %v208 = vld [vmem:[%s196 + $0x48] sm:$0xff]
        %v209 = vld [vmem:[%s196 + $0x50] sm:$0xff]
        %v210 = vld [vmem:[%s196 + $0x58] sm:$0xff]
        %v211 = vld [vmem:[%s196 + $0x60] sm:$0xff]
        %v212 = vld [vmem:[%s196 + $0x68] sm:$0xff]
        %v213 = vld [vmem:[%s196 + $0x70] sm:$0xff]
        %v214 = vld [vmem:[%s196 + $0x78] sm:$0xff]
        %v215 = vld [vmem:[%s164] sm:$0xf]
        %v216 = vld [vmem:[%s164 + $0x4] sm:$0xf]
        %v217 = vld [vmem:[%s164 + $0x8] sm:$0xf]
        %v218 = vld [vmem:[%s164 + $0xc] sm:$0xf]
        %v219 = vld [vmem:[%s164 + $0x10] sm:$0xf]
        %v220 = vld [vmem:[%s164 + $0x14] sm:$0xf]
        %v221 = vld [vmem:[%s164 + $0x18] sm:$0xf]
        %v222 = vld [vmem:[%s164 + $0x1c] sm:$0xf]
        %v223 = vld [vmem:[%s164 + $0x20] sm:$0xf]
        %v224 = vld [vmem:[%s164 + $0x24] sm:$0xf]
        %v225 = vld [vmem:[%s164 + $0x28] sm:$0xf]
        %v226 = vld [vmem:[%s164 + $0x2c] sm:$0xf]
        %v227 = vld [vmem:[%s164 + $0x30] sm:$0xf]
        %v228 = vld [vmem:[%s164 + $0x34] sm:$0xf]
        %v229 = vld [vmem:[%s164 + $0x38] sm:$0xf]
        %v230 = vld [vmem:[%s164 + $0x3c] sm:$0xf]
        %v231 = vld [vmem:[%s164 + $0x40] sm:$0xf]
        %v232 = vld [vmem:[%s164 + $0x44] sm:$0xf]
        %v233 = vld [vmem:[%s164 + $0x48] sm:$0xf]
        %v234 = vld [vmem:[%s164 + $0x4c] sm:$0xf]
        %v235 = vld [vmem:[%s164 + $0x50] sm:$0xf]
        %v236 = vld [vmem:[%s164 + $0x54] sm:$0xf]
        %v237 = vld [vmem:[%s164 + $0x58] sm:$0xf]
        %v238 = vld [vmem:[%s164 + $0x5c] sm:$0xf]
        %v239 = vld [vmem:[%s164 + $0x60] sm:$0xf]
        %v240 = vld [vmem:[%s164 + $0x64] sm:$0xf]
        %v241 = vld [vmem:[%s164 + $0x68] sm:$0xf]
        %v242 = vld [vmem:[%s164 + $0x6c] sm:$0xf]
        %v243 = vld [vmem:[%s164 + $0x70] sm:$0xf]
        %v244 = vld [vmem:[%s164 + $0x74] sm:$0xf]
        %v245 = vld [vmem:[%s164 + $0x78] sm:$0xf]
        %v246 = vld [vmem:[%s164 + $0x7c] sm:$0xf]
        %v247 = vld [vmem:[%s164 + $0x80] sm:$0xf]
        %v248 = vld [vmem:[%s164 + $0x84] sm:$0xf]
        %v249 = vld [vmem:[%s164 + $0x88] sm:$0xf]
        %v250 = vld [vmem:[%s164 + $0x8c] sm:$0xf]
        %v251 = vld [vmem:[%s164 + $0x90] sm:$0xf]
        %v252 = vld [vmem:[%s164 + $0x94] sm:$0xf]
        %v253 = vld [vmem:[%s164 + $0x98] sm:$0xf]
        %v254 = vld [vmem:[%s164 + $0x9c] sm:$0xf]
        %v255 = vld [vmem:[%s164 + $0xa0] sm:$0xf]
        %v256 = vld [vmem:[%s164 + $0xa4] sm:$0xf]
        %v257 = vld [vmem:[%s164 + $0xa8] sm:$0xf]
        %v258 = vld [vmem:[%s164 + $0xac] sm:$0xf]
        %v259 = vld [vmem:[%s164 + $0xb0] sm:$0xf]
        %v260 = vld [vmem:[%s164 + $0xb4] sm:$0xf]
        %v261 = vld [vmem:[%s164 + $0xb8] sm:$0xf]
        %v262 = vld [vmem:[%s164 + $0xbc] sm:$0xf]
        %v263 = vld [vmem:[%s164 + $0xc0] sm:$0xf]
        %v264 = vld [vmem:[%s164 + $0xc4] sm:$0xf]
        %v265 = vld [vmem:[%s164 + $0xc8] sm:$0xf]
        %v266 = vld [vmem:[%s164 + $0xcc] sm:$0xf]
        %v267 = vld [vmem:[%s164 + $0xd0] sm:$0xf]
        %v268 = vld [vmem:[%s164 + $0xd4] sm:$0xf]
        %v269 = vld [vmem:[%s164 + $0xd8] sm:$0xf]
        %v270 = vld [vmem:[%s164 + $0xdc] sm:$0xf]
        %v271 = vld [vmem:[%s164 + $0xe0] sm:$0xf]
        %v272 = vld [vmem:[%s164 + $0xe4] sm:$0xf]
        %v273 = vld [vmem:[%s164 + $0xe8] sm:$0xf]
        %v274 = vld [vmem:[%s164 + $0xec] sm:$0xf]
        %v275 = vld [vmem:[%s164 + $0xf0] sm:$0xf]
        %v276 = vld [vmem:[%s164 + $0xf4] sm:$0xf]
        %v277 = vld [vmem:[%s164 + $0xf8] sm:$0xf]
        %v278 = vld [vmem:[%s164 + $0xfc] sm:$0xf]
        %v295 = vunpack.c.l.b16 %v199
        %v296 = vunpack.c.h.b16 %v199
        %v297 = vunpack.c.l.b16 %v200
        %v298 = vunpack.c.h.b16 %v200
        %v299 = vunpack.c.l.b16 %v201
        %v300 = vunpack.c.h.b16 %v201
        %v301 = vunpack.c.l.b16 %v202
        %v302 = vunpack.c.h.b16 %v202
        %v303 = vunpack.c.l.b16 %v203
        %v304 = vunpack.c.h.b16 %v203
        %v305 = vunpack.c.l.b16 %v204
        %v306 = vunpack.c.h.b16 %v204
        %v307 = vunpack.c.l.b16 %v205
        %v308 = vunpack.c.h.b16 %v205
        %v309 = vunpack.c.l.b16 %v206
        %v310 = vunpack.c.h.b16 %v206
        %v311 = vunpack.c.l.b16 %v207
        %v312 = vunpack.c.h.b16 %v207
        %v313 = vunpack.c.l.b16 %v208
        %v314 = vunpack.c.h.b16 %v208
        %v315 = vunpack.c.l.b16 %v209
        %v316 = vunpack.c.h.b16 %v209
        %v317 = vunpack.c.l.b16 %v210
        %v318 = vunpack.c.h.b16 %v210
        %v319 = vunpack.c.l.b16 %v211
        %v320 = vunpack.c.h.b16 %v211
        %v321 = vunpack.c.l.b16 %v212
        %v322 = vunpack.c.h.b16 %v212
        %v323 = vunpack.c.l.b16 %v213
        %v324 = vunpack.c.h.b16 %v213
        %v325 = vunpack.c.l.b16 %v214
        %v326 = vunpack.c.h.b16 %v214
        %v327 = vpack.c.b16 %v299, %v295
        %v328 = vpack.c.b16 %v300, %v296
        %v329 = vpack.c.b16 %v301, %v297
        %v330 = vpack.c.b16 %v302, %v298
        %v331 = vpack.c.b16 %v307, %v303
        %v332 = vpack.c.b16 %v308, %v304
        %v333 = vpack.c.b16 %v309, %v305
        %v334 = vpack.c.b16 %v310, %v306
        %v335 = vpack.c.b16 %v315, %v311
        %v336 = vpack.c.b16 %v316, %v312
        %v337 = vpack.c.b16 %v317, %v313
        %v338 = vpack.c.b16 %v318, %v314
        %v339 = vpack.c.b16 %v323, %v319
        %v340 = vpack.c.b16 %v324, %v320
        %v341 = vpack.c.b16 %v325, %v321
        %v342 = vpack.c.b16 %v326, %v322
        %v423 = vunpack.c.l.b16 %v215
        %v424 = vunpack.c.l.b16 %v216
        %v425 = vunpack.c.l.b16 %v217
        %v426 = vunpack.c.l.b16 %v218
        %v427 = vunpack.c.l.b16 %v219
        %v428 = vunpack.c.l.b16 %v220
        %v429 = vunpack.c.l.b16 %v221
        %v430 = vunpack.c.l.b16 %v222
        %v431 = vunpack.c.l.b16 %v223
        %v432 = vunpack.c.l.b16 %v224
        %v433 = vunpack.c.l.b16 %v225
        %v434 = vunpack.c.l.b16 %v226
        %v435 = vunpack.c.l.b16 %v227
        %v436 = vunpack.c.l.b16 %v228
        %v437 = vunpack.c.l.b16 %v229
        %v438 = vunpack.c.l.b16 %v230
        %v439 = vunpack.c.l.b16 %v231
        %v440 = vunpack.c.l.b16 %v232
        %v441 = vunpack.c.l.b16 %v233
        %v442 = vunpack.c.l.b16 %v234
        %v443 = vunpack.c.l.b16 %v235
        %v444 = vunpack.c.l.b16 %v236
        %v445 = vunpack.c.l.b16 %v237
        %v446 = vunpack.c.l.b16 %v238
        %v447 = vunpack.c.l.b16 %v239
        %v448 = vunpack.c.l.b16 %v240
        %v449 = vunpack.c.l.b16 %v241
        %v450 = vunpack.c.l.b16 %v242
        %v451 = vunpack.c.l.b16 %v243
        %v452 = vunpack.c.l.b16 %v244
        %v453 = vunpack.c.l.b16 %v245
        %v454 = vunpack.c.l.b16 %v246
        %v455 = vunpack.c.l.b16 %v247
        %v456 = vunpack.c.l.b16 %v248
        %v457 = vunpack.c.l.b16 %v249
        %v458 = vunpack.c.l.b16 %v250
        %v459 = vunpack.c.l.b16 %v251
        %v460 = vunpack.c.l.b16 %v252
        %v461 = vunpack.c.l.b16 %v253
        %v462 = vunpack.c.l.b16 %v254
        %v463 = vunpack.c.l.b16 %v255
        %v464 = vunpack.c.l.b16 %v256
        %v465 = vunpack.c.l.b16 %v257
        %v466 = vunpack.c.l.b16 %v258
        %v467 = vunpack.c.l.b16 %v259
        %v468 = vunpack.c.l.b16 %v260
        %v469 = vunpack.c.l.b16 %v261
        %v470 = vunpack.c.l.b16 %v262
        %v471 = vunpack.c.l.b16 %v263
        %v472 = vunpack.c.l.b16 %v264
        %v473 = vunpack.c.l.b16 %v265
        %v474 = vunpack.c.l.b16 %v266
        %v475 = vunpack.c.l.b16 %v267
        %v476 = vunpack.c.l.b16 %v268
        %v477 = vunpack.c.l.b16 %v269
        %v478 = vunpack.c.l.b16 %v270
        %v479 = vunpack.c.l.b16 %v271
        %v480 = vunpack.c.l.b16 %v272
        %v481 = vunpack.c.l.b16 %v273
        %v482 = vunpack.c.l.b16 %v274
        %v483 = vunpack.c.l.b16 %v275
        %v484 = vunpack.c.l.b16 %v276
        %v485 = vunpack.c.l.b16 %v277
        %v486 = vunpack.c.l.b16 %v278
        %v487 = vpack.c.b16 %v424, %v423
        %v488 = vpack.c.b16 %v426, %v425
        %v489 = vpack.c.b16 %v428, %v427
        %v490 = vpack.c.b16 %v430, %v429
        %v491 = vpack.c.b16 %v432, %v431
        %v492 = vpack.c.b16 %v434, %v433
        %v493 = vpack.c.b16 %v436, %v435
        %v494 = vpack.c.b16 %v438, %v437
        %v495 = vpack.c.b16 %v440, %v439
        %v496 = vpack.c.b16 %v442, %v441
        %v497 = vpack.c.b16 %v444, %v443
        %v498 = vpack.c.b16 %v446, %v445
        %v499 = vpack.c.b16 %v448, %v447
        %v500 = vpack.c.b16 %v450, %v449
        %v501 = vpack.c.b16 %v452, %v451
        %v502 = vpack.c.b16 %v454, %v453
        %v503 = vpack.c.b16 %v456, %v455
        %v504 = vpack.c.b16 %v458, %v457
        %v505 = vpack.c.b16 %v460, %v459
        %v506 = vpack.c.b16 %v462, %v461
        %v507 = vpack.c.b16 %v464, %v463
        %v508 = vpack.c.b16 %v466, %v465
        %v509 = vpack.c.b16 %v468, %v467
        %v510 = vpack.c.b16 %v470, %v469
        %v511 = vpack.c.b16 %v472, %v471
        %v512 = vpack.c.b16 %v474, %v473
        %v513 = vpack.c.b16 %v476, %v475
        %v514 = vpack.c.b16 %v478, %v477
        %v515 = vpack.c.b16 %v480, %v479
        %v516 = vpack.c.b16 %v482, %v481
        %v517 = vpack.c.b16 %v484, %v483
        %v518 = vpack.c.b16 %v486, %v485
        %551 = vmatpush.bf16.msra.mxu0 %v494
        %552 = vmatpush.bf16.msra.mxu0 %v493
        %553 = vmatpush.bf16.msra.mxu0 %v492
        %554 = vmatpush.bf16.msra.mxu0 %v491
        %555 = vmatpush.bf16.msra.mxu0 %v490
        %556 = vmatpush.bf16.msra.mxu0 %v489
        %557 = vmatpush.bf16.msra.mxu0 %v488
        %558 = vmatpush.bf16.msra.mxu0 %v487
        %559 = vmatmul.bf16.gmra.mxu0 %v327
        %v560 = vpop.f32.mrf.mxu0
        %v561 = vadd.f32 0.0, %v560
        %v562 = vpop.f32.mrf.mxu0
        %v563 = vadd.f32 0.0, %v562
        %564 = vmatmul.bf16.gmra.mxu0 %v331
        %v565 = vpop.f32.mrf.mxu0
        %v566 = vadd.f32 0.0, %v565
        %v567 = vpop.f32.mrf.mxu0
        %v568 = vadd.f32 0.0, %v567
        %569 = vmatmul.bf16.gmra.mxu0 %v335
        %v570 = vpop.f32.mrf.mxu0
        %v571 = vadd.f32 0.0, %v570
        %v572 = vpop.f32.mrf.mxu0
        %v573 = vadd.f32 0.0, %v572
        %574 = vmatmul.bf16.gmra.mxu0 %v339
        %v575 = vpop.f32.mrf.mxu0
        %v576 = vadd.f32 0.0, %v575
        %v577 = vpop.f32.mrf.mxu0
        %v578 = vadd.f32 0.0, %v577
        %579 = vdwg.mxu0
        %580 = vmatpush.bf16.msra.mxu0 %v502
        %581 = vmatpush.bf16.msra.mxu0 %v501
        %582 = vmatpush.bf16.msra.mxu0 %v500
        %583 = vmatpush.bf16.msra.mxu0 %v499
        %584 = vmatpush.bf16.msra.mxu0 %v498
        %585 = vmatpush.bf16.msra.mxu0 %v497
        %586 = vmatpush.bf16.msra.mxu0 %v496
        %587 = vmatpush.bf16.msra.mxu0 %v495
        %588 = vmatmul.bf16.gmra.mxu0 %v328
        %v589 = vpop.f32.mrf.mxu0
        %v590 = vadd.f32 %v561, %v589
        %v591 = vpop.f32.mrf.mxu0
        %v592 = vadd.f32 %v563, %v591
        %593 = vmatmul.bf16.gmra.mxu0 %v332
        %v594 = vpop.f32.mrf.mxu0
        %v595 = vadd.f32 %v566, %v594
        %v596 = vpop.f32.mrf.mxu0
        %v597 = vadd.f32 %v568, %v596
        %598 = vmatmul.bf16.gmra.mxu0 %v336
        %v599 = vpop.f32.mrf.mxu0
        %v600 = vadd.f32 %v571, %v599
        %v601 = vpop.f32.mrf.mxu0
        %v602 = vadd.f32 %v573, %v601
        %603 = vmatmul.bf16.gmra.mxu0 %v340
        %v604 = vpop.f32.mrf.mxu0
        %v605 = vadd.f32 %v576, %v604
        %v606 = vpop.f32.mrf.mxu0
        %v607 = vadd.f32 %v578, %v606
        %608 = vdwg.mxu0
        %609 = vmatpush.bf16.msra.mxu0 %v510
        %610 = vmatpush.bf16.msra.mxu0 %v509
        %611 = vmatpush.bf16.msra.mxu0 %v508
        %612 = vmatpush.bf16.msra.mxu0 %v507
        %613 = vmatpush.bf16.msra.mxu0 %v506
        %614 = vmatpush.bf16.msra.mxu0 %v505
        %615 = vmatpush.bf16.msra.mxu0 %v504
        %616 = vmatpush.bf16.msra.mxu0 %v503
        %617 = vmatmul.bf16.gmra.mxu0 %v329
        %v618 = vpop.f32.mrf.mxu0
        %v619 = vadd.f32 %v590, %v618
        %v620 = vpop.f32.mrf.mxu0
        %v621 = vadd.f32 %v592, %v620
        %622 = vmatmul.bf16.gmra.mxu0 %v333
        %v623 = vpop.f32.mrf.mxu0
        %v624 = vadd.f32 %v595, %v623
        %v625 = vpop.f32.mrf.mxu0
        %v626 = vadd.f32 %v597, %v625
        %627 = vmatmul.bf16.gmra.mxu0 %v337
        %v628 = vpop.f32.mrf.mxu0
        %v629 = vadd.f32 %v600, %v628
        %v630 = vpop.f32.mrf.mxu0
        %v631 = vadd.f32 %v602, %v630
        %632 = vmatmul.bf16.gmra.mxu0 %v341
        %v633 = vpop.f32.mrf.mxu0
        %v634 = vadd.f32 %v605, %v633
        %v635 = vpop.f32.mrf.mxu0
        %v636 = vadd.f32 %v607, %v635
        %637 = vdwg.mxu0
        %638 = vmatpush.bf16.msra.mxu0 %v518
        %639 = vmatpush.bf16.msra.mxu0 %v517
        %640 = vmatpush.bf16.msra.mxu0 %v516
        %641 = vmatpush.bf16.msra.mxu0 %v515
        %642 = vmatpush.bf16.msra.mxu0 %v514
        %643 = vmatpush.bf16.msra.mxu0 %v513
        %644 = vmatpush.bf16.msra.mxu0 %v512
        %645 = vmatpush.bf16.msra.mxu0 %v511
        %646 = vmatmul.bf16.gmra.mxu0 %v330
        %v647 = vpop.f32.mrf.mxu0
        %v648 = vadd.f32 %v619, %v647
        %v649 = vpop.f32.mrf.mxu0
        %v650 = vadd.f32 %v621, %v649
        %651 = vmatmul.bf16.gmra.mxu0 %v334
        %v652 = vpop.f32.mrf.mxu0
        %v653 = vadd.f32 %v624, %v652
        %v654 = vpop.f32.mrf.mxu0
        %v655 = vadd.f32 %v626, %v654
        %656 = vmatmul.bf16.gmra.mxu0 %v338
        %v657 = vpop.f32.mrf.mxu0
        %v658 = vadd.f32 %v629, %v657
        %v659 = vpop.f32.mrf.mxu0
        %v660 = vadd.f32 %v631, %v659
        %661 = vmatmul.bf16.gmra.mxu0 %v342
        %v662 = vpop.f32.mrf.mxu0
        %v663 = vadd.f32 %v634, %v662
        %v664 = vpop.f32.mrf.mxu0
        %v665 = vadd.f32 %v636, %v664
        %666 = vdwg.mxu0
        %667 = vst [vmem:[%s190] sm:$0xff] %v648
        %668 = vst [vmem:[%s190 + $0x8] sm:$0xff] %v650
        %669 = vst [vmem:[%s190 + $0x10] sm:$0xff] %v653
        %670 = vst [vmem:[%s190 + $0x18] sm:$0xff] %v655
        %671 = vst [vmem:[%s190 + $0x20] sm:$0xff] %v658
        %672 = vst [vmem:[%s190 + $0x28] sm:$0xff] %v660
        %673 = vst [vmem:[%s190 + $0x30] sm:$0xff] %v663
        %674 = vst [vmem:[%s190 + $0x38] sm:$0xff] %v665
        %s675 = sand.u32 %s90, 1
        %s676 = sand.u32 %s90, 1
        %s677 = smul.addr %s676, 64
        %s678 = scalar_lea.vmem [#allocation4], %s677
        // Predicated region
        $region33: #{_linear_forward.1} parent=27 // pred_check
          %p679 = pneg %p100
        $region34: #{_linear_forward.1} parent=27 // pred_check_branch
          %681 = sbr.rel (%p679) target = $region36
        $region35: #{_linear_forward.1} parent=27 // pred_region
          %s682 = smul.u32 8, %s20
          %s683 = smul.addr %s682, 2
          %s684 = sadd.s32 %s21, %s683
          %s685 = smul.addr %s684, 8
          %s686 = scalar_lea.vmem %s2, %s685
          // Predicated region
          $region37: #{_linear_forward.1} parent=35 // pred_check
            _
          $region38: #{_linear_forward.1} parent=35 // pred_check_branch
            %688 = sbr.rel (0) target = $region40
          $region39: #{_linear_forward.1} parent=35 // pred_region
            // Predicated region
            $region41: #{_linear_forward.1} parent=39 // pred_check
              _
            $region42: #{_linear_forward.1} parent=39 // pred_check_branch
              %690 = sbr.rel (0) target = $region44
            $region43: #{_linear_forward.1} parent=39 // pred_region
              // Predicated region
              $region56: #{_linear_forward.1} parent=43 // pred_check
                _
              $region57: #{_linear_forward.1} parent=43 // pred_check_branch
                %720 = sbr.rel (0) target = $region59
              $region58: #{_linear_forward.1} parent=43 // pred_region
                loop: start=0, step=1, limit=1
                $region60: #{_linear_forward.1} parent=58 // loop_pre_header
                  _
                $region61: #{_linear_forward.1} parent=58 // loop_header
                  %s722 = sphi 0, %s726
                  %p723 = scmp.ge.s32.totalorder %s722, 1
                  %s727 = sphi %s678, %s678
                  %s728 = sphi %s686, %s686
                $region62: #{_linear_forward.1} parent=58 // loop_header_branch
                  %725 = sbr.rel (%p723) target = $region66
                $region63: #{_linear_forward.1} parent=58 // loop_body
                  %v729 = vld [vmem:[%s727] sm:$0xff]
                  %730 = vst [vmem:[%s728] sm:$0xff] %v729
                  %v731 = vld [vmem:[%s727 + $0x8] sm:$0xff]
                  %732 = vst [vmem:[%s728 + $0x10] sm:$0xff] %v731
                  %v733 = vld [vmem:[%s727 + $0x10] sm:$0xff]
                  %734 = vst [vmem:[%s728 + $0x20] sm:$0xff] %v733
                  %v735 = vld [vmem:[%s727 + $0x18] sm:$0xff]
                  %736 = vst [vmem:[%s728 + $0x30] sm:$0xff] %v735
                  %v737 = vld [vmem:[%s727 + $0x20] sm:$0xff]
                  %738 = vst [vmem:[%s728 + $0x40] sm:$0xff] %v737
                  %v739 = vld [vmem:[%s727 + $0x28] sm:$0xff]
                  %740 = vst [vmem:[%s728 + $0x50] sm:$0xff] %v739
                  %v741 = vld [vmem:[%s727 + $0x30] sm:$0xff]
                  %742 = vst [vmem:[%s728 + $0x60] sm:$0xff] %v741
                  %v743 = vld [vmem:[%s727 + $0x38] sm:$0xff]
                  %744 = vst [vmem:[%s728 + $0x70] sm:$0xff] %v743
                $region64: #{_linear_forward.1} parent=58 // loop_footer
                  %s726 = sadd.s32 1, %s722
                $region65: #{_linear_forward.1} parent=58 // loop_footer_branch
                  %721 = sbr.rel target = $region61
                $region66: #{_linear_forward.1} parent=58 // loop_exit
                  _
              $region59: #{_linear_forward.1} parent=43 // pred_fallthru
                _
              // Predicated region
              $region67: #{_linear_forward.1} parent=43 // pred_check
                _
              $region68: #{_linear_forward.1} parent=43 // pred_check_branch
                %746 = sbr.rel target = $region70
              $region69: #{_linear_forward.1} parent=43 // pred_region
                _
              $region70: #{_linear_forward.1} parent=43 // pred_fallthru
                _
            $region44: #{_linear_forward.1} parent=39 // pred_fallthru
              _
            // Predicated region
            $region45: #{_linear_forward.1} parent=39 // pred_check
              _
            $region46: #{_linear_forward.1} parent=39 // pred_check_branch
              %692 = sbr.rel target = $region48
            $region47: #{_linear_forward.1} parent=39 // pred_region
              %s694 = ssub.s32 256, 1
              loop: start=0, step=1, limit=1
              $region49: #{_linear_forward.1} parent=47 // loop_pre_header
                _
              $region50: #{_linear_forward.1} parent=47 // loop_header
                %s696 = sphi 0, %s700
                %p697 = scmp.ge.s32.totalorder %s696, 1
                %s701 = sphi %s678, %s678
                %s702 = sphi %s686, %s686
              $region51: #{_linear_forward.1} parent=47 // loop_header_branch
                %699 = sbr.rel (%p697) target = $region55
              $region52: #{_linear_forward.1} parent=47 // loop_body
                %v703 = vld [vmem:[%s701] sm:%s694]
                %704 = vst [vmem:[%s702] sm:%s694] %v703
                %v705 = vld [vmem:[%s701 + $0x8] sm:%s694]
                %706 = vst [vmem:[%s702 + $0x10] sm:%s694] %v705
                %v707 = vld [vmem:[%s701 + $0x10] sm:%s694]
                %708 = vst [vmem:[%s702 + $0x20] sm:%s694] %v707
                %v709 = vld [vmem:[%s701 + $0x18] sm:%s694]
                %710 = vst [vmem:[%s702 + $0x30] sm:%s694] %v709
                %v711 = vld [vmem:[%s701 + $0x20] sm:%s694]
                %712 = vst [vmem:[%s702 + $0x40] sm:%s694] %v711
                %v713 = vld [vmem:[%s701 + $0x28] sm:%s694]
                %714 = vst [vmem:[%s702 + $0x50] sm:%s694] %v713
                %v715 = vld [vmem:[%s701 + $0x30] sm:%s694]
                %716 = vst [vmem:[%s702 + $0x60] sm:%s694] %v715
                %v717 = vld [vmem:[%s701 + $0x38] sm:%s694]
                %718 = vst [vmem:[%s702 + $0x70] sm:%s694] %v717
              $region53: #{_linear_forward.1} parent=47 // loop_footer
                %s700 = sadd.s32 1, %s696
              $region54: #{_linear_forward.1} parent=47 // loop_footer_branch
                %695 = sbr.rel target = $region50
              $region55: #{_linear_forward.1} parent=47 // loop_exit
                _
            $region48: #{_linear_forward.1} parent=39 // pred_fallthru
              _
          $region40: #{_linear_forward.1} parent=35 // pred_fallthru
            _
          %747 = vnop
        $region36: #{_linear_forward.1} parent=27 // pred_fallthru
          _
      $region28: #{_linear_forward.1} parent=5 // pred_fallthru
        _
      %p748 = scmp.le.s32.totalorder 2, %s11
      // Predicated region
      $region71: #{_linear_forward.1} parent=5 // pred_check
        %p749 = pneg %p748
      $region72: #{_linear_forward.1} parent=5 // pred_check_branch
        %751 = sbr.rel (%p749) target = $region74
      $region73: #{_linear_forward.1} parent=5 // pred_region
        %s752 = ssub.s32 %s11, 2
        // Predicated region
        $region75: #{_linear_forward.1} parent=73 // pred_check
          %p753 = pneg %p106
        $region76: #{_linear_forward.1} parent=73 // pred_check_branch
          %755 = sbr.rel (%p753) target = $region78
        $region77: #{_linear_forward.1} parent=73 // pred_region
          %s756 = sand.u32 %s91, 1
          %s757 = sand.u32 %s91, 1
          %s758 = smul.addr %s757, 64
          %s759 = scalar_lea.vmem [#allocation4], %s758
        $region78: #{_linear_forward.1} parent=73 // pred_fallthru
          _
      $region74: #{_linear_forward.1} parent=5 // pred_fallthru
        _
    $region6: #{_linear_forward.1} parent=1 // loop_footer
      %s15 = sadd.s32 1, %s11
    $region7: #{_linear_forward.1} parent=1 // loop_footer_branch
      %10 = sbr.rel target = $region3
    $region8: #{_linear_forward.1} parent=1 // loop_exit
      _
    %760 = vsyncpa [#allocation3], 1
    %s761 = scalar_lea.sflag [#allocation3], 1
    %762 = vsyncpa %s761, 1

</llo_original>
